<compile_context>
chip_gen: v6e
topology: v6e:2x2x1
jax: 0.10.0
libtpu: 0.0.40
codegen_flags: <defaults>
</compile_context>

<pallas_src>
import functools

import jax
import jax.numpy as jnp
from jax.experimental import pallas as pl
from jax.experimental.pallas import tpu as pltpu

LANE = 128          # lane-dense padding target
SUBLANE = 8         # f32 sublane quantum
NEG_SLOPE = 0.01    # torch.nn.LeakyReLU default negative_slope
MAX_NODE_TILE = 512 # node tile for features / adjacency streaming


def _round_up(v: int, m: int) -> int:
    return ((v + m - 1) // m) * m


# ---------------------------------------------------------------------------
# Kernel 1: fused Fourier-KAN linear
#   out = [cos(1x)..cos(Gx), sin(1x)..sin(Gx)] @ W_slab + bias
#   - single MXU matmul (K = 2*G*in_p) instead of 2*G tiny matmuls
#   - cos/sin of higher harmonics via angle-addition recurrence (VPU only)
# ---------------------------------------------------------------------------
def _fourier_linear_kernel(x_ref, w_ref, b_ref, out_ref, *, gridsize):
    x = x_ref[...]                                  # (row_tile, in_p) f32
    c1 = jnp.cos(x)
    s1 = jnp.sin(x)
    cos_terms = [c1]
    sin_terms = [s1]
    c, s = c1, s1
    for _ in range(1, gridsize):                    # cos/sin((g+1)x) recurrence
        c, s = c * c1 - s * s1, s * c1 + c * s1
        cos_terms.append(c)
        sin_terms.append(s)
    feats = jnp.concatenate(cos_terms + sin_terms, axis=-1)   # (row_tile, 2*G*in_p)
    out_ref[...] = (
        jnp.dot(feats, w_ref[...], preferred_element_type=jnp.float32) + b_ref[...]
    )


def fourier_kan_linear(x, w_slab, bias_row, *, gridsize, row_tile):
    n_p, in_p = x.shape
    k_dim, out_p = w_slab.shape
    assert k_dim == 2 * gridsize * in_p
    assert n_p % row_tile == 0
    return pl.pallas_call(
        functools.partial(_fourier_linear_kernel, gridsize=gridsize),
        out_shape=jax.ShapeDtypeStruct((n_p, out_p), jnp.float32),
        grid_spec=pltpu.PrefetchScalarGridSpec(
            num_scalar_prefetch=0,
            grid=(n_p // row_tile,),
            in_specs=[
                pl.BlockSpec((row_tile, in_p), lambda i: (i, 0)),
                pl.BlockSpec((k_dim, out_p), lambda i: (0, 0)),   # resident weights
                pl.BlockSpec((1, out_p), lambda i: (0, 0)),
            ],
            out_specs=pl.BlockSpec((row_tile, out_p), lambda i: (i, 0)),
        ),
        compiler_params=pltpu.CompilerParams(
            dimension_semantics=("parallel",)),
    )(x, w_slab, bias_row)


# ---------------------------------------------------------------------------
# Kernel 2: tiled graph aggregation fused with residual + LeakyReLU
#   h_new = leaky_relu(adjT @ phi + bias + h_prev)
#   adjT / phi streamed as bf16 (counts exact in bf16), f32 accumulate.
# TODO(synk): for large sparse graphs replace the dense adjT stream with a
#   scalar-prefetch CSR/edge-list gather so HBM traffic scales with E, not N^2.
# ---------------------------------------------------------------------------
def _aggregate_kernel(adjT_ref, phi_ref, hres_ref, bias_ref, out_ref, acc_ref):
    k = pl.program_id(1)

    @pl.when(k == 0)
    def _():
        acc_ref[...] = jnp.zeros_like(acc_ref)

    acc_ref[...] += jnp.dot(adjT_ref[...], phi_ref[...],
                            preferred_element_type=jnp.float32)

    @pl.when(k == pl.num_programs(1) - 1)
    def _():
        z = acc_ref[...] + bias_ref[...] + hres_ref[...]
        out_ref[...] = jnp.where(z >= 0.0, z, NEG_SLOPE * z)


def graph_aggregate_residual(adjT_bf16, phi_bf16, h_res, bias_row, *, tile):
    n_p = adjT_bf16.shape[0]
    h_p = phi_bf16.shape[1]
    assert n_p % tile == 0
    return pl.pallas_call(
        _aggregate_kernel,
        out_shape=jax.ShapeDtypeStruct((n_p, h_p), jnp.float32),
        grid_spec=pltpu.PrefetchScalarGridSpec(
            num_scalar_prefetch=0,
            grid=(n_p // tile, n_p // tile),
            in_specs=[
                pl.BlockSpec((tile, tile), lambda i, k: (i, k)),   # adjT (bf16)
                pl.BlockSpec((tile, h_p), lambda i, k: (k, 0)),    # phi  (bf16)
                pl.BlockSpec((tile, h_p), lambda i, k: (i, 0)),    # residual h (f32)
                pl.BlockSpec((1, h_p), lambda i, k: (0, 0)),       # layer bias
            ],
            out_specs=pl.BlockSpec((tile, h_p), lambda i, k: (i, 0)),
            scratch_shapes=[pltpu.VMEM((tile, h_p), jnp.float32)],
        ),
        compiler_params=pltpu.CompilerParams(
            dimension_semantics=("parallel", "arbitrary")),
    )(adjT_bf16, phi_bf16, h_res, bias_row)


# ---------------------------------------------------------------------------
# Kernel 3: graph pooling + readout KAN_linear(gridsize=1) + sigmoid
# ---------------------------------------------------------------------------
def _readout_kernel(h_ref, w_ref, b_ref, out_ref, *, pooling):
    h = h_ref[...]                                   # (N, H_p) f32, real nodes only
    if pooling == "sum":
        y = jnp.sum(h, axis=0, keepdims=True)
    elif pooling == "avg":
        y = jnp.mean(h, axis=0, keepdims=True)
    elif pooling == "max":
        y = jnp.max(h, axis=0, keepdims=True)
    else:
        raise ValueError(f"No pooling found: {pooling}")
    feats = jnp.concatenate([jnp.cos(y), jnp.sin(y)], axis=-1)   # gridsize = 1
    z = jnp.dot(feats, w_ref[...], preferred_element_type=jnp.float32) + b_ref[...]
    out_ref[...] = 1.0 / (1.0 + jnp.exp(-z))         # sigmoid


def graph_readout(h_real_rows, w_slab, bias_row, *, pooling):
    _, out_p = w_slab.shape
    return pl.pallas_call(
        functools.partial(_readout_kernel, pooling=pooling),
        out_shape=jax.ShapeDtypeStruct((1, out_p), jnp.float32),
        in_specs=[
            pl.BlockSpec(memory_space=pltpu.MemorySpace.VMEM),
            pl.BlockSpec(memory_space=pltpu.MemorySpace.VMEM),
            pl.BlockSpec(memory_space=pltpu.MemorySpace.VMEM),
        ],
        out_specs=pl.BlockSpec(memory_space=pltpu.MemorySpace.VMEM),
    )(h_real_rows, w_slab, bias_row)


# ---------------------------------------------------------------------------
# Parameter preparation (hoisted out of the forward: slabs built once).
# ---------------------------------------------------------------------------
def prepare_fourier_slab(coeffs):
    """(2, out, in, G) torch-layout Fourier coefficients -> lane-padded
    (2*G*in_p, out_p) f32 slab matching the kernel feature order
    [cos(1x)..cos(Gx), sin(1x)..sin(Gx)], input dim zero-padded to 128 lanes."""
    _, out_f, in_f, g = coeffs.shape
    in_p = _round_up(in_f, LANE)
    out_p = _round_up(out_f, LANE)
    w = jnp.transpose(coeffs.astype(jnp.float32), (0, 3, 2, 1))   # (2, G, in, out)
    w = jnp.pad(w, ((0, 0), (0, 0), (0, in_p - in_f), (0, out_p - out_f)))
    return w.reshape(2 * g * in_p, out_p)


def prepare_bias(bias, out_f):
    out_p = _round_up(out_f, LANE)
    b = jnp.zeros((1, out_p), jnp.float32)
    if bias is not None:
        b = b.at[0, :out_f].set(bias.astype(jnp.float32))
    return b


def prepare_params(raw, *, hidden_feat, out_dim):
    c0, b0 = raw["kan_line"]
    cr, br = raw["readout"]
    return {
        "hidden": hidden_feat,
        "out_dim": out_dim,
        "kan_line": (prepare_fourier_slab(c0), prepare_bias(b0, c0.shape[1])),
        "layers": [(prepare_fourier_slab(c), prepare_bias(b, c.shape[1]))
                   for (c, b) in raw["layers"]],
        "readout": (prepare_fourier_slab(cr), prepare_bias(br, cr.shape[1])),
    }


# ---------------------------------------------------------------------------
# Full KA_GNN_two forward
# ---------------------------------------------------------------------------
def ka_gnn_two_forward(x, adjT, prep, *, gridsize, pooling):
    n, in_f = x.shape
    hidden = prep["hidden"]
    h_p = _round_up(hidden, LANE)
    in_p = _round_up(in_f, LANE)

    tile = min(MAX_NODE_TILE, _round_up(n, SUBLANE))
    n_p = _round_up(n, tile)

    x_p = jnp.pad(x.astype(jnp.float32), ((0, n_p - n), (0, in_p - in_f)))
    adjT_p = jnp.pad(adjT.astype(jnp.float32),
                     ((0, n_p - n), (0, n_p - n))).astype(jnp.bfloat16)
    zero_bias = jnp.zeros((1, h_p), jnp.float32)

    # h = KAN_linear(in_feat -> hidden)(x)
    w0, b0 = prep["kan_line"]
    h = fourier_kan_linear(x_p, w0, b0, gridsize=gridsize, row_tile=tile)

    # GNN layers: h = leaky_relu(adjT @ FourierKAN(h) + bias + h)
    for (wl, bl) in prep["layers"]:
        phi = fourier_kan_linear(h, wl, zero_bias, gridsize=gridsize, row_tile=tile)
        h = graph_aggregate_residual(adjT_p, phi.astype(jnp.bfloat16), h, bl, tile=tile)

    # pooling over the real nodes + KAN_linear(hidden -> out, grid=1) + sigmoid
    wr, br = prep["readout"]
    y = graph_readout(h[:n, :], wr, br, pooling=pooling)
    return y[:, :prep["out_dim"]]


# ---------------------------------------------------------------------------
# Pure-JAX reference (torch semantics; aggregation uses bf16-rounded operands to
# match the kernel's intentional bf16 adjacency/phi quantization).
# ---------------------------------------------------------------------------
def _ref_kan_linear(x, coeffs, bias):
    g = coeffs.shape[-1]
    k = jnp.arange(1, g + 1, dtype=jnp.float32)
    kx = x[:, :, None] * k[None, None, :]
    y = (jnp.einsum("nig,jig->nj", jnp.cos(kx), coeffs[0])
         + jnp.einsum("nig,jig->nj", jnp.sin(kx), coeffs[1]))
    if bias is not None:
        y = y + bias[None, :]
    return y


def _bf16(v):
    return v.astype(jnp.bfloat16).astype(jnp.float32)


def _ref_forward(x, adjT, raw, *, pooling):
    c0, b0 = raw["kan_line"]
    h = _ref_kan_linear(x, c0, b0)
    for (c, b) in raw["layers"]:
        phi = _ref_kan_linear(h, c, None)
        m = jnp.dot(_bf16(adjT), _bf16(phi))
        if b is not None:
            m = m + b[None, :]
        z = m + h
        h = jnp.where(z >= 0.0, z, NEG_SLOPE * z)
    if pooling == "sum":
        y = jnp.sum(h, axis=0, keepdims=True)
    elif pooling == "avg":
        y = jnp.mean(h, axis=0, keepdims=True)
    else:
        y = jnp.max(h, axis=0, keepdims=True)
    cr, br = raw["readout"]
    z = _ref_kan_linear(y, cr, br)
    return 1.0 / (1.0 + jnp.exp(-z))


if __name__ == "__main__":
    key = jax.random.PRNGKey(0)
    keys = jax.random.split(key, 7)

    # KA_GNN_two config (small, but lane-aware: hidden/out padded to 128 internally).
    num_nodes, in_feat, hidden_feat, out_dim = 16, 16, 64, 2
    grid_feat, num_layers, pooling, use_bias = 4, 3, "sum", False

    def init_coeffs(k, out_f, in_f, g):
        return (jax.random.normal(k, (2, out_f, in_f, g), dtype=jnp.float32)
                / (jnp.sqrt(float(in_f)) * jnp.sqrt(float(g))))

    raw = {
        # KAN_linear(in_feat, hidden_feat, grid_feat, addbias=use_bias)
        "kan_line": (init_coeffs(keys[0], hidden_feat, in_feat, grid_feat),
                     jnp.zeros((hidden_feat,), jnp.float32) if use_bias else None),
        # (num_layers - 1) x NaiveFourierKANLayer(hidden, hidden, grid_feat, addbias=use_bias)
        "layers": [(init_coeffs(keys[1 + l], hidden_feat, hidden_feat, grid_feat),
                    jnp.zeros((hidden_feat,), jnp.float32) if use_bias else None)
                   for l in range(num_layers - 1)],
        # Readout = KAN_linear(hidden_feat, out, gridsize=1, addbias=True) + Sigmoid
        "readout": (init_coeffs(keys[3], out_dim, hidden_feat, 1),
                    0.1 * jax.random.normal(keys[4], (out_dim,), dtype=jnp.float32)),
    }

    # Node features and a small random directed graph with self-loops.
    x = jax.random.normal(keys[5], (num_nodes, in_feat), dtype=jnp.float32)
    adj = (jax.random.uniform(keys[6], (num_nodes, num_nodes)) < 0.3).astype(jnp.float32)
    adj = adj + jnp.eye(num_nodes, dtype=jnp.float32)
    adjT = adj.T                       # adjT[dst, src] = edge multiplicity

    prep = prepare_params(raw, hidden_feat=hidden_feat, out_dim=out_dim)

    out = ka_gnn_two_forward(x, adjT, prep, gridsize=grid_feat, pooling=pooling)
    out = jax.block_until_ready(out)
    assert out.shape == (1, out_dim)

    # --- check 1: fused Fourier-KAN kernel (pure f32 path), tight tolerance ----
    tile = min(MAX_NODE_TILE, _round_up(num_nodes, SUBLANE))
    n_p = _round_up(num_nodes, tile)
    in_p = _round_up(in_feat, LANE)
    x_p = jnp.pad(x, ((0, n_p - num_nodes), (0, in_p - in_feat)))
    h_kan = fourier_kan_linear(x_p, *prep["kan_line"], gridsize=grid_feat, row_tile=tile)
    h_ref = _ref_kan_linear(x, raw["kan_line"][0], raw["kan_line"][1])
    assert jnp.allclose(h_kan[:num_nodes, :hidden_feat], h_ref, atol=1e-4, rtol=1e-4), \
        "KAN_linear stage mismatch"

    # --- check 2: full KA_GNN_two forward vs bf16-aware reference --------------
    ref = _ref_forward(x, adjT, raw, pooling=pooling)
    assert jnp.allclose(out, ref, atol=2e-2, rtol=2e-2), "forward mismatch vs reference"

    print("KERNEL_OK")
</pallas_src>

<mosaic_0001>
module attributes {stable_mosaic.version = 11 : i64} {
  func.func @_fourier_linear_kernel(%arg0: i32, %arg1: memref<16x128xf32, #tpu.memory_space<vmem>>, %arg2: memref<1024x128xf32, #tpu.memory_space<vmem>>, %arg3: memref<1x128xf32, #tpu.memory_space<vmem>>, %arg4: memref<16x128xf32, #tpu.memory_space<vmem>>) attributes {dimension_semantics = [#tpu.dimension_semantics<parallel>], iteration_bounds = array<i64: 1>, scalar_prefetch = 0 : i64, scratch_operands = 0 : i64, tpu.core_type = #tpu.core_type<tc>, window_params = [{transform_indices = @transform_0, window_bounds = array<i64: 16, 128>}, {pipeline_mode = #tpu.pipeline_mode<synchronous>, transform_indices = @transform_1, window_bounds = array<i64: 1024, 128>}, {pipeline_mode = #tpu.pipeline_mode<synchronous>, transform_indices = @transform_2, window_bounds = array<i64: 1, 128>}, {transform_indices = @transform_3, window_bounds = array<i64: 16, 128>}]} {
    %c0 = arith.constant 0 : index
    %c0_0 = arith.constant 0 : index
    %0 = vector.load %arg1[%c0, %c0_0] : memref<16x128xf32, #tpu.memory_space<vmem>>, vector<16x128xf32>
    %1 = math.cos %0 : vector<16x128xf32>
    %2 = math.sin %0 : vector<16x128xf32>
    %3 = arith.mulf %1, %1 : vector<16x128xf32>
    %4 = arith.mulf %2, %2 : vector<16x128xf32>
    %5 = arith.subf %3, %4 : vector<16x128xf32>
    %6 = arith.mulf %2, %1 : vector<16x128xf32>
    %7 = arith.mulf %1, %2 : vector<16x128xf32>
    %8 = arith.addf %6, %7 : vector<16x128xf32>
    %9 = arith.mulf %5, %1 : vector<16x128xf32>
    %10 = arith.mulf %8, %2 : vector<16x128xf32>
    %11 = arith.subf %9, %10 : vector<16x128xf32>
    %12 = arith.mulf %8, %1 : vector<16x128xf32>
    %13 = arith.mulf %5, %2 : vector<16x128xf32>
    %14 = arith.addf %12, %13 : vector<16x128xf32>
    %15 = arith.mulf %11, %1 : vector<16x128xf32>
    %16 = arith.mulf %14, %2 : vector<16x128xf32>
    %17 = arith.subf %15, %16 : vector<16x128xf32>
    %18 = arith.mulf %14, %1 : vector<16x128xf32>
    %19 = arith.mulf %11, %2 : vector<16x128xf32>
    %20 = arith.addf %18, %19 : vector<16x128xf32>
    %21 = tpu.concatenate %1, %5, %11, %17, %2, %8, %14, %20 in 1 : vector<16x128xf32>, vector<16x128xf32>, vector<16x128xf32>, vector<16x128xf32>, vector<16x128xf32>, vector<16x128xf32>, vector<16x128xf32>, vector<16x128xf32> -> vector<16x1024xf32>
    %c0_1 = arith.constant 0 : index
    %c0_2 = arith.constant 0 : index
    %22 = vector.load %arg2[%c0_1, %c0_2] : memref<1024x128xf32, #tpu.memory_space<vmem>>, vector<1024x128xf32>
    %cst = arith.constant dense<0.000000e+00> : vector<16x128xf32>
    %23 = tpu.matmul %21, %22, %cst {dimension_numbers = #tpu.dot_dimension_numbers<[1], [0], [0], [1], [0, 0, 1, 1], [], []>} : vector<16x1024xf32>, vector<1024x128xf32>, vector<16x128xf32> -> vector<16x128xf32>
    %c0_3 = arith.constant 0 : index
    %c0_4 = arith.constant 0 : index
    %24 = vector.load %arg3[%c0_3, %c0_4] : memref<1x128xf32, #tpu.memory_space<vmem>>, vector<1x128xf32>
    %25 = vector.broadcast %24 : vector<1x128xf32> to vector<16x128xf32>
    %26 = arith.addf %23, %25 : vector<16x128xf32>
    %c0_5 = arith.constant 0 : index
    %c0_6 = arith.constant 0 : index
    %27 = vector.load %arg4[%c0_5, %c0_6] : memref<16x128xf32, #tpu.memory_space<vmem>>, vector<16x128xf32>
    tpu.vector_store %arg4[%c0_5, %c0_6], %26 {strides = array<i32>} : memref<16x128xf32, #tpu.memory_space<vmem>>, vector<16x128xf32>,
    return
  }
  func.func @transform_0(%arg0: i32) -> (i32, i32) {
    %c0_i32 = arith.constant 0 : i32
    %c0_i32_0 = arith.constant 0 : i32
    return %arg0, %c0_i32 : i32, i32
  }
  func.func @transform_1(%arg0: i32) -> (i32, i32) {
    %c0_i32 = arith.constant 0 : i32
    %c0_i32_0 = arith.constant 0 : i32
    %c0_i32_1 = arith.constant 0 : i32
    return %c0_i32, %c0_i32_0 : i32, i32
  }
  func.func @transform_2(%arg0: i32) -> (i32, i32) {
    %c0_i32 = arith.constant 0 : i32
    %c0_i32_0 = arith.constant 0 : i32
    %c0_i32_1 = arith.constant 0 : i32
    return %c0_i32, %c0_i32_0 : i32, i32
  }
  func.func @transform_3(%arg0: i32) -> (i32, i32) {
    %c0_i32 = arith.constant 0 : i32
    %c0_i32_0 = arith.constant 0 : i32
    return %arg0, %c0_i32 : i32, i32
  }
}

</mosaic_0001>

<llo_original>
// kernel: tpu_custom_call.1
$region0: #{tpu_custom_call.1}
  #allocation0 [shape = 'u32[]', space=smem, size = 0x4, offset = 0x4, fixed_abs, tag = 'smem constant byte address 0x4 - core index']
  #allocation1 [shape = 'u32[144,128]{1,0:T(1,128)}', space=vmem, size = 0x12000, scoped, tag = 'internal scratch']
  %s0 = inlined_call_operand.hbm [shape: f32[16,128], index: 0, kind: input, shape index: {}]
  %s1 = inlined_call_operand.hbm [shape: f32[1024,128], index: 1, kind: input, shape index: {}]
  %s2 = inlined_call_operand.vmem [shape: f32[1,128], index: 2, kind: input, shape index: {}]
  %s3 = inlined_call_operand.hbm [shape: f32[16,128], index: 3, kind: output, shape index: {}]
  %s4 = sld [smem:[#allocation0]]
  $region30: #{tpu_custom_call.1} parent=0
    _
  %s6 = ssub.s32 1, %s4
  %s7 = scalar_select 0, %s6, %s4
  $region1: #{tpu_custom_call.1} parent=0
    #allocation2 [shape = 'u8[8192]{0}', space=vmem, size = 0x2000, scoped, tag = 'input window, operand 0, single buffered']
    #allocation3 [shape = 's32[1]{0}', space=sflag, size = 0x4, scoped, tag = 'scoped memory for tpu_custom_call.1']
    #allocation4 [shape = 's32[1]{0}', space=sflag, size = 0x4, scoped, tag = 'scoped memory for tpu_custom_call.1']
    #allocation5 [shape = 'u8[524288]{0}', space=vmem, size = 0x80000, scoped, tag = 'input window, operand 1, single buffered']
    #allocation6 [shape = 's32[1]{0}', space=sflag, size = 0x4, scoped, tag = 'scoped memory for tpu_custom_call.1']
    #allocation7 [shape = 'u8[8192]{0}', space=vmem, size = 0x2000, scoped, tag = 'output window, operand 0, single buffered']
    %8 = vsyncpa [#allocation3], 0
    %9 = vsyncpa [#allocation6], 0
    %10 = vsyncpa [#allocation4], 0
    // Predicated region
    $region2: #{tpu_custom_call.1} parent=1 // pred_check
      _
    $region3: #{tpu_custom_call.1} parent=1 // pred_check_branch
      %12 = sbr.rel (0) target = $region5
    $region4: #{tpu_custom_call.1} parent=1 // pred_region
      %s14 = ssub.s32 256, 256
      %15 = vsyncadd [#allocation3], %s14
      %s16 = sshll.u32 [#allocation2], 4
      %s17 = int_to_ptr.vmem [resolvable:$true] %s16
      %22 = dma.hbm_to_vmem [thread:$0]  %s0, 256, %s17, [#allocation3], 128, 128, 8
    $region5: #{tpu_custom_call.1} parent=1 // pred_fallthru
      _
    // Predicated region
    $region6: #{tpu_custom_call.1} parent=1 // pred_check
      _
    $region7: #{tpu_custom_call.1} parent=1 // pred_check_branch
      %24 = sbr.rel (0) target = $region9
    $region8: #{tpu_custom_call.1} parent=1 // pred_region
      %s26 = ssub.s32 16384, 16384
      %27 = vsyncadd [#allocation6], %s26
      %s28 = sshll.u32 [#allocation5], 4
      %s29 = int_to_ptr.vmem [resolvable:$true] %s28
      %34 = dma.hbm_to_vmem [thread:$0]  %s1, 16384, %s29, [#allocation6], 128, 128, 8
    $region9: #{tpu_custom_call.1} parent=1 // pred_fallthru
      _
    // Predicated region
    $region10: #{tpu_custom_call.1} parent=1 // pred_check
      _
    $region11: #{tpu_custom_call.1} parent=1 // pred_check_branch
      %36 = sbr.rel (0) target = $region13
    $region12: #{tpu_custom_call.1} parent=1 // pred_region
      _
    $region13: #{tpu_custom_call.1} parent=1 // pred_fallthru
      _
    // Predicated region
    $region14: #{tpu_custom_call.1} parent=1 // pred_check
      _
    $region15: #{tpu_custom_call.1} parent=1 // pred_check_branch
      %38 = sbr.rel (0) target = $region17
    $region16: #{tpu_custom_call.1} parent=1 // pred_region
      %39 = dma.done [#allocation3], 256
    $region17: #{tpu_custom_call.1} parent=1 // pred_fallthru
      _
    // Predicated region
    $region18: #{tpu_custom_call.1} parent=1 // pred_check
      _
    $region19: #{tpu_custom_call.1} parent=1 // pred_check_branch
      %41 = sbr.rel (0) target = $region21
    $region20: #{tpu_custom_call.1} parent=1 // pred_region
      %42 = dma.done [#allocation6], 16384
    $region21: #{tpu_custom_call.1} parent=1 // pred_fallthru
      _
    %v43 = vld [vmem:[#allocation2] sm:$0xff]
    %v44 = vld [vmem:[#allocation2 + $0x8] sm:$0xff]
    %v45 = vand.u32 2147483647, %v43
    %vm46 = vcmp.le.f32.partialorder %v45, 0.7853982
    %vm47 = vcmp.lt.s32.totalorder %v43, 0
    %v48 = vand.u32 %v43, 2139095040
    %v49 = vshrl.u32 %v48, 23
    %v50 = vsub.s32 %v49, 127
    %v51 = vand.u32 2147483647, %v43
    %v52 = vand.u32 %v51, 8388607
    %v53 = vor.u32 %v52, 8388608
    %v54 = vsub.s32 0, %v53
    %v55 = vadd.s32 %v50, 1
    %vm56 = vcmp.gt.s32.totalorder %v55, 0
    %v57 = vsel %vm56, %v55, 0
    %v58 = vshrl.u32 %v57, 5
    %v59 = vand.u32 %v57, 31
    %v60 = vsub.s32 32, %v59
    %v61 = vshrl.u32 683565275, %v60
    %v62 = vshll.u32 683565275, %v59
    %v63 = vshrl.u32 2475754826, %v60
    %v64 = vor.u32 %v62, %v63
    %v65 = vshll.u32 2475754826, %v59
    %v66 = vshrl.u32 2131351028, %v60
    %v67 = vor.u32 %v65, %v66
    %v68 = vshll.u32 2131351028, %v59
    %v69 = vshrl.u32 2102212464, %v60
    %v70 = vor.u32 %v68, %v69
    %v71 = vshll.u32 2102212464, %v59
    %v72 = vshrl.u32 920167782, %v60
    %v73 = vor.u32 %v71, %v72
    %v74 = vshll.u32 920167782, %v59
    %v75 = vshrl.u32 1326507024, %v60
    %v76 = vor.u32 %v74, %v75
    %vm77 = vcmp.lt.s32.totalorder %v58, 1
    %vm78 = vcmp.lt.s32.totalorder %v58, 2
    %vm79 = vcmp.lt.s32.totalorder %v58, 3
    %vm80 = vcmp.lt.s32.totalorder %v58, 4
    %v81 = vsel %vm77, %v61, %v64
    %v82 = vsel %vm80, %v70, 2102212464
    %v83 = vsel %vm79, %v67, %v82
    %v84 = vsel %vm78, %v81, %v83
    %v85 = vsel %vm77, %v64, %v67
    %v86 = vsel %vm80, %v73, 920167782
    %v87 = vsel %vm79, %v70, %v86
    %v88 = vsel %vm78, %v85, %v87
    %v89 = vsel %vm77, %v67, %v70
    %v90 = vsel %vm80, %v76, 1326507024
    %v91 = vsel %vm79, %v73, %v90
    %v92 = vsel %vm78, %v89, %v91
    %v93 = vshll.u32 %v53, 8
    %v94 = vmul.u32.u64.compose %v93, %v92
    %v95 = vextract.low.u32 %v94
    %v96 = vextract.high.u32 %v94
    %v97 = vmul.u32.u64.compose %v93, %v88
    %v98 = vextract.low.u32 %v97
    %v99 = vextract.high.u32 %v97
    %v100 = vmul.u32 %v93, %v84
    %v101 = vadd.s32 %v96, %v98
    %vm102 = vc.u32 %v96, %v98
    %v103 = vadd.s32 %v99, 1
    %v104 = vsel %vm102, %v103, %v99
    %v105 = vadd.s32 %v100, %v104
    %v106 = vadd.s32 %v105, 536870912
    %v107 = vshrl.u32 %v106, 30
    %v108 = vshll.u32 %v107, 30
    %v109 = vsub.s32 %v105, %v108
    %vm110 = vcmp.lt.s32.totalorder %v109, 0
    %v111 = vsub.s32 0, %v109
    %v112 = vsel %vm110, %v111, %v109
    %v113 = vclz %v112
    %v114 = vsub.s32 %v113, 2
    %vm115 = vcmp.gt.s32.totalorder 0, %v114
    %v116 = vsel %vm115, 0, %v114
    %v117 = vsub.s32 32, %v116
    %v118 = vshll.u32 %v109, %v116
    %v119 = vshrl.u32 %v101, %v117
    %v120 = vor.u32 %v118, %v119
    %v121 = vsub.s32 4294967266, %v116
    %v122 = vadd.s32 %v121, 127
    %v123 = vshll.u32 %v122, 23
    %v124 = vor.u32 4788187, %v123
    %v125 = vand.u32 2147483647, %v124
    %v127 = vcvt.s32.f32 %v120
    %v128 = vmul.f32 %v127, %v125
    %v129 = vxor.u32 %v128, 2147483648
    %v130 = vsel %vm47, %v129, %v128
    %v131 = vsub.s32 4, %v107
    %v132 = vsel %vm47, %v131, %v107
    %v133 = vsel %vm46, %v43, %v130
    %v134 = vsel %vm46, 0, %v132
    %v135 = vcosq.f32.pop %v133
    %v136 = vsinq.f32.pop %v133
    %vm137 = vweird.f32 %v43
    %v138 = vand.u32 %v134, 3
    %vm139 = vcmp.lt.s32.totalorder %v138, 2
    %vm140 = vcmp.eq.s32.totalorder %v138, 0
    %v141 = vxor.u32 %v136, 2147483648
    %v142 = vsel %vm140, %v135, %v141
    %vm143 = vcmp.eq.s32.totalorder %v138, 2
    %v144 = vxor.u32 %v135, 2147483648
    %v145 = vsel %vm143, %v144, %v136
    %v146 = vsel %vm139, %v142, %v145
    %v147 = vsel %vm137, nan, %v146
    %v148 = vand.u32 2147483647, %v44
    %vm149 = vcmp.le.f32.partialorder %v148, 0.7853982
    %vm150 = vcmp.lt.s32.totalorder %v44, 0
    %v151 = vand.u32 %v44, 2139095040
    %v152 = vshrl.u32 %v151, 23
    %v153 = vsub.s32 %v152, 127
    %v154 = vand.u32 2147483647, %v44
    %v155 = vand.u32 %v154, 8388607
    %v156 = vor.u32 %v155, 8388608
    %v157 = vsub.s32 0, %v156
    %v158 = vadd.s32 %v153, 1
    %vm159 = vcmp.gt.s32.totalorder %v158, 0
    %v160 = vsel %vm159, %v158, 0
    %v161 = vshrl.u32 %v160, 5
    %v162 = vand.u32 %v160, 31
    %v163 = vsub.s32 32, %v162
    %v164 = vshrl.u32 683565275, %v163
    %v165 = vshll.u32 683565275, %v162
    %v166 = vshrl.u32 2475754826, %v163
    %v167 = vor.u32 %v165, %v166
    %v168 = vshll.u32 2475754826, %v162
    %v169 = vshrl.u32 2131351028, %v163
    %v170 = vor.u32 %v168, %v169
    %v171 = vshll.u32 2131351028, %v162
    %v172 = vshrl.u32 2102212464, %v163
    %v173 = vor.u32 %v171, %v172
    %v174 = vshll.u32 2102212464, %v162
    %v175 = vshrl.u32 920167782, %v163
    %v176 = vor.u32 %v174, %v175
    %v177 = vshll.u32 920167782, %v162
    %v178 = vshrl.u32 1326507024, %v163
    %v179 = vor.u32 %v177, %v178
    %vm180 = vcmp.lt.s32.totalorder %v161, 1
    %vm181 = vcmp.lt.s32.totalorder %v161, 2
    %vm182 = vcmp.lt.s32.totalorder %v161, 3
    %vm183 = vcmp.lt.s32.totalorder %v161, 4
    %v184 = vsel %vm180, %v164, %v167
    %v185 = vsel %vm183, %v173, 2102212464
    %v186 = vsel %vm182, %v170, %v185
    %v187 = vsel %vm181, %v184, %v186
    %v188 = vsel %vm180, %v167, %v170
    %v189 = vsel %vm183, %v176, 920167782
    %v190 = vsel %vm182, %v173, %v189
    %v191 = vsel %vm181, %v188, %v190
    %v192 = vsel %vm180, %v170, %v173
    %v193 = vsel %vm183, %v179, 1326507024
    %v194 = vsel %vm182, %v176, %v193
    %v195 = vsel %vm181, %v192, %v194
    %v196 = vshll.u32 %v156, 8
    %v197 = vmul.u32.u64.compose %v196, %v195
    %v198 = vextract.low.u32 %v197
    %v199 = vextract.high.u32 %v197
    %v200 = vmul.u32.u64.compose %v196, %v191
    %v201 = vextract.low.u32 %v200
    %v202 = vextract.high.u32 %v200
    %v203 = vmul.u32 %v196, %v187
    %v204 = vadd.s32 %v199, %v201
    %vm205 = vc.u32 %v199, %v201
    %v206 = vadd.s32 %v202, 1
    %v207 = vsel %vm205, %v206, %v202
    %v208 = vadd.s32 %v203, %v207
    %v209 = vadd.s32 %v208, 536870912
    %v210 = vshrl.u32 %v209, 30
    %v211 = vshll.u32 %v210, 30
    %v212 = vsub.s32 %v208, %v211
    %vm213 = vcmp.lt.s32.totalorder %v212, 0
    %v214 = vsub.s32 0, %v212
    %v215 = vsel %vm213, %v214, %v212
    %v216 = vclz %v215
    %v217 = vsub.s32 %v216, 2
    %vm218 = vcmp.gt.s32.totalorder 0, %v217
    %v219 = vsel %vm218, 0, %v217
    %v220 = vsub.s32 32, %v219
    %v221 = vshll.u32 %v212, %v219
    %v222 = vshrl.u32 %v204, %v220
    %v223 = vor.u32 %v221, %v222
    %v224 = vsub.s32 4294967266, %v219
    %v225 = vadd.s32 %v224, 127
    %v226 = vshll.u32 %v225, 23
    %v227 = vor.u32 4788187, %v226
    %v228 = vand.u32 2147483647, %v227
    %v230 = vcvt.s32.f32 %v223
    %v231 = vmul.f32 %v230, %v228
    %v232 = vxor.u32 %v231, 2147483648
    %v233 = vsel %vm150, %v232, %v231
    %v234 = vsub.s32 4, %v210
    %v235 = vsel %vm150, %v234, %v210
    %v236 = vsel %vm149, %v44, %v233
    %v237 = vsel %vm149, 0, %v235
    %v238 = vcosq.f32.pop %v236
    %v239 = vsinq.f32.pop %v236
    %vm240 = vweird.f32 %v44
    %v241 = vand.u32 %v237, 3
    %vm242 = vcmp.lt.s32.totalorder %v241, 2
    %vm243 = vcmp.eq.s32.totalorder %v241, 0
    %v244 = vxor.u32 %v239, 2147483648
    %v245 = vsel %vm243, %v238, %v244
    %vm246 = vcmp.eq.s32.totalorder %v241, 2
    %v247 = vxor.u32 %v238, 2147483648
    %v248 = vsel %vm246, %v247, %v239
    %v249 = vsel %vm242, %v245, %v248
    %v250 = vsel %vm240, nan, %v249
    %v251 = vand.u32 2147483647, %v43
    %vm252 = vcmp.le.f32.partialorder %v251, 0.7853982
    %vm253 = vcmp.lt.s32.totalorder %v43, 0
    %v254 = vand.u32 %v43, 2139095040
    %v255 = vshrl.u32 %v254, 23
    %v256 = vsub.s32 %v255, 127
    %v257 = vand.u32 2147483647, %v43
    %v258 = vand.u32 %v257, 8388607
    %v259 = vor.u32 %v258, 8388608
    %v260 = vsub.s32 0, %v259
    %v261 = vadd.s32 %v256, 1
    %vm262 = vcmp.gt.s32.totalorder %v261, 0
    %v263 = vsel %vm262, %v261, 0
    %v264 = vshrl.u32 %v263, 5
    %v265 = vand.u32 %v263, 31
    %v266 = vsub.s32 32, %v265
    %v267 = vshrl.u32 683565275, %v266
    %v268 = vshll.u32 683565275, %v265
    %v269 = vshrl.u32 2475754826, %v266
    %v270 = vor.u32 %v268, %v269
    %v271 = vshll.u32 2475754826, %v265
    %v272 = vshrl.u32 2131351028, %v266
    %v273 = vor.u32 %v271, %v272
    %v274 = vshll.u32 2131351028, %v265
    %v275 = vshrl.u32 2102212464, %v266
    %v276 = vor.u32 %v274, %v275
    %v277 = vshll.u32 2102212464, %v265
    %v278 = vshrl.u32 920167782, %v266
    %v279 = vor.u32 %v277, %v278
    %v280 = vshll.u32 920167782, %v265
    %v281 = vshrl.u32 1326507024, %v266
    %v282 = vor.u32 %v280, %v281
    %vm283 = vcmp.lt.s32.totalorder %v264, 1
    %vm284 = vcmp.lt.s32.totalorder %v264, 2
    %vm285 = vcmp.lt.s32.totalorder %v264, 3
    %vm286 = vcmp.lt.s32.totalorder %v264, 4
    %v287 = vsel %vm283, %v267, %v270
    %v288 = vsel %vm286, %v276, 2102212464
    %v289 = vsel %vm285, %v273, %v288
    %v290 = vsel %vm284, %v287, %v289
    %v291 = vsel %vm283, %v270, %v273
    %v292 = vsel %vm286, %v279, 920167782
    %v293 = vsel %vm285, %v276, %v292
    %v294 = vsel %vm284, %v291, %v293
    %v295 = vsel %vm283, %v273, %v276
    %v296 = vsel %vm286, %v282, 1326507024
    %v297 = vsel %vm285, %v279, %v296
    %v298 = vsel %vm284, %v295, %v297
    %v299 = vshll.u32 %v259, 8
    %v300 = vmul.u32.u64.compose %v299, %v298
    %v301 = vextract.low.u32 %v300
    %v302 = vextract.high.u32 %v300
    %v303 = vmul.u32.u64.compose %v299, %v294
    %v304 = vextract.low.u32 %v303
    %v305 = vextract.high.u32 %v303
    %v306 = vmul.u32 %v299, %v290
    %v307 = vadd.s32 %v302, %v304
    %vm308 = vc.u32 %v302, %v304
    %v309 = vadd.s32 %v305, 1
    %v310 = vsel %vm308, %v309, %v305
    %v311 = vadd.s32 %v306, %v310
    %v312 = vadd.s32 %v311, 536870912
    %v313 = vshrl.u32 %v312, 30
    %v314 = vshll.u32 %v313, 30
    %v315 = vsub.s32 %v311, %v314
    %vm316 = vcmp.lt.s32.totalorder %v315, 0
    %v317 = vsub.s32 0, %v315
    %v318 = vsel %vm316, %v317, %v315
    %v319 = vclz %v318
    %v320 = vsub.s32 %v319, 2
    %vm321 = vcmp.gt.s32.totalorder 0, %v320
    %v322 = vsel %vm321, 0, %v320
    %v323 = vsub.s32 32, %v322
    %v324 = vshll.u32 %v315, %v322
    %v325 = vshrl.u32 %v307, %v323
    %v326 = vor.u32 %v324, %v325
    %v327 = vsub.s32 4294967266, %v322
    %v328 = vadd.s32 %v327, 127
    %v329 = vshll.u32 %v328, 23
    %v330 = vor.u32 4788187, %v329
    %v331 = vand.u32 2147483647, %v330
    %v333 = vcvt.s32.f32 %v326
    %v334 = vmul.f32 %v333, %v331
    %v335 = vxor.u32 %v334, 2147483648
    %v336 = vsel %vm253, %v335, %v334
    %v337 = vsub.s32 4, %v313
    %v338 = vsel %vm253, %v337, %v313
    %v339 = vsel %vm252, %v43, %v336
    %v340 = vsel %vm252, 0, %v338
    %v341 = vcosq.f32.pop %v339
    %v342 = vsinq.f32.pop %v339
    %vm343 = vweird.f32 %v43
    %v344 = vadd.s32 %v340, 3
    %v345 = vand.u32 %v344, 3
    %vm346 = vcmp.lt.s32.totalorder %v345, 2
    %vm347 = vcmp.eq.s32.totalorder %v345, 0
    %v348 = vxor.u32 %v342, 2147483648
    %v349 = vsel %vm347, %v341, %v348
    %vm350 = vcmp.eq.s32.totalorder %v345, 2
    %v351 = vxor.u32 %v341, 2147483648
    %v352 = vsel %vm350, %v351, %v342
    %v353 = vsel %vm346, %v349, %v352
    %v354 = vsel %vm343, nan, %v353
    %v355 = vand.u32 2147483647, %v44
    %vm356 = vcmp.le.f32.partialorder %v355, 0.7853982
    %vm357 = vcmp.lt.s32.totalorder %v44, 0
    %v358 = vand.u32 %v44, 2139095040
    %v359 = vshrl.u32 %v358, 23
    %v360 = vsub.s32 %v359, 127
    %v361 = vand.u32 2147483647, %v44
    %v362 = vand.u32 %v361, 8388607
    %v363 = vor.u32 %v362, 8388608
    %v364 = vsub.s32 0, %v363
    %v365 = vadd.s32 %v360, 1
    %vm366 = vcmp.gt.s32.totalorder %v365, 0
    %v367 = vsel %vm366, %v365, 0
    %v368 = vshrl.u32 %v367, 5
    %v369 = vand.u32 %v367, 31
    %v370 = vsub.s32 32, %v369
    %v371 = vshrl.u32 683565275, %v370
    %v372 = vshll.u32 683565275, %v369
    %v373 = vshrl.u32 2475754826, %v370
    %v374 = vor.u32 %v372, %v373
    %v375 = vshll.u32 2475754826, %v369
    %v376 = vshrl.u32 2131351028, %v370
    %v377 = vor.u32 %v375, %v376
    %v378 = vshll.u32 2131351028, %v369
    %v379 = vshrl.u32 2102212464, %v370
    %v380 = vor.u32 %v378, %v379
    %v381 = vshll.u32 2102212464, %v369
    %v382 = vshrl.u32 920167782, %v370
    %v383 = vor.u32 %v381, %v382
    %v384 = vshll.u32 920167782, %v369
    %v385 = vshrl.u32 1326507024, %v370
    %v386 = vor.u32 %v384, %v385
    %vm387 = vcmp.lt.s32.totalorder %v368, 1
    %vm388 = vcmp.lt.s32.totalorder %v368, 2
    %vm389 = vcmp.lt.s32.totalorder %v368, 3
    %vm390 = vcmp.lt.s32.totalorder %v368, 4
    %v391 = vsel %vm387, %v371, %v374
    %v392 = vsel %vm390, %v380, 2102212464
    %v393 = vsel %vm389, %v377, %v392
    %v394 = vsel %vm388, %v391, %v393
    %v395 = vsel %vm387, %v374, %v377
    %v396 = vsel %vm390, %v383, 920167782
    %v397 = vsel %vm389, %v380, %v396
    %v398 = vsel %vm388, %v395, %v397
    %v399 = vsel %vm387, %v377, %v380
    %v400 = vsel %vm390, %v386, 1326507024
    %v401 = vsel %vm389, %v383, %v400
    %v402 = vsel %vm388, %v399, %v401
    %v403 = vshll.u32 %v363, 8
    %v404 = vmul.u32.u64.compose %v403, %v402
    %v405 = vextract.low.u32 %v404
    %v406 = vextract.high.u32 %v404
    %v407 = vmul.u32.u64.compose %v403, %v398
    %v408 = vextract.low.u32 %v407
    %v409 = vextract.high.u32 %v407
    %v410 = vmul.u32 %v403, %v394
    %v411 = vadd.s32 %v406, %v408
    %vm412 = vc.u32 %v406, %v408
    %v413 = vadd.s32 %v409, 1
    %v414 = vsel %vm412, %v413, %v409
    %v415 = vadd.s32 %v410, %v414
    %v416 = vadd.s32 %v415, 536870912
    %v417 = vshrl.u32 %v416, 30
    %v418 = vshll.u32 %v417, 30
    %v419 = vsub.s32 %v415, %v418
    %vm420 = vcmp.lt.s32.totalorder %v419, 0
    %v421 = vsub.s32 0, %v419
    %v422 = vsel %vm420, %v421, %v419
    %v423 = vclz %v422
    %v424 = vsub.s32 %v423, 2
    %vm425 = vcmp.gt.s32.totalorder 0, %v424
    %v426 = vsel %vm425, 0, %v424
    %v427 = vsub.s32 32, %v426
    %v428 = vshll.u32 %v419, %v426
    %v429 = vshrl.u32 %v411, %v427
    %v430 = vor.u32 %v428, %v429
    %v431 = vsub.s32 4294967266, %v426
    %v432 = vadd.s32 %v431, 127
    %v433 = vshll.u32 %v432, 23
    %v434 = vor.u32 4788187, %v433
    %v435 = vand.u32 2147483647, %v434
    %v437 = vcvt.s32.f32 %v430
    %v438 = vmul.f32 %v437, %v435
    %v439 = vxor.u32 %v438, 2147483648
    %v440 = vsel %vm357, %v439, %v438
    %v441 = vsub.s32 4, %v417
    %v442 = vsel %vm357, %v441, %v417
    %v443 = vsel %vm356, %v44, %v440
    %v444 = vsel %vm356, 0, %v442
    %v445 = vcosq.f32.pop %v443
    %v446 = vsinq.f32.pop %v443
    %vm447 = vweird.f32 %v44
    %v448 = vadd.s32 %v444, 3
    %v449 = vand.u32 %v448, 3
    %vm450 = vcmp.lt.s32.totalorder %v449, 2
    %vm451 = vcmp.eq.s32.totalorder %v449, 0
    %v452 = vxor.u32 %v446, 2147483648
    %v453 = vsel %vm451, %v445, %v452
    %vm454 = vcmp.eq.s32.totalorder %v449, 2
    %v455 = vxor.u32 %v445, 2147483648
    %v456 = vsel %vm454, %v455, %v446
    %v457 = vsel %vm450, %v453, %v456
    %v458 = vsel %vm447, nan, %v457
    %v459 = vmul.f32 %v147, %v147
    %v460 = vmul.f32 %v250, %v250
    %v461 = vmul.f32 %v354, %v354
    %v462 = vmul.f32 %v458, %v458
    %v463 = vsub.f32 %v459, %v461
    %v464 = vsub.f32 %v460, %v462
    %v465 = vmul.f32 %v354, %v147
    %v466 = vmul.f32 %v458, %v250
    %v467 = vadd.f32 %v465, %v465
    %v468 = vadd.f32 %v466, %v466
    %v469 = vmul.f32 %v463, %v147
    %v470 = vmul.f32 %v464, %v250
    %v471 = vmul.f32 %v467, %v354
    %v472 = vmul.f32 %v468, %v458
    %v473 = vsub.f32 %v469, %v471
    %v474 = vsub.f32 %v470, %v472
    %v475 = vmul.f32 %v467, %v147
    %v476 = vmul.f32 %v468, %v250
    %v477 = vmul.f32 %v463, %v354
    %v478 = vmul.f32 %v464, %v458
    %v479 = vadd.f32 %v475, %v477
    %v480 = vadd.f32 %v476, %v478
    %v481 = vmul.f32 %v473, %v147
    %v482 = vmul.f32 %v474, %v250
    %v483 = vmul.f32 %v479, %v354
    %v484 = vmul.f32 %v480, %v458
    %v485 = vsub.f32 %v481, %v483
    %v486 = vsub.f32 %v482, %v484
    %v487 = vmul.f32 %v479, %v147
    %v488 = vmul.f32 %v480, %v250
    %v489 = vmul.f32 %v473, %v354
    %v490 = vmul.f32 %v474, %v458
    %v491 = vadd.f32 %v487, %v489
    %v492 = vadd.f32 %v488, %v490
    %v493 = vld [vmem:[#allocation5] sm:$0xff]
    %v494 = vld [vmem:[#allocation5 + $0x8] sm:$0xff]
    %v495 = vld [vmem:[#allocation5 + $0x10] sm:$0xff]
    %v496 = vld [vmem:[#allocation5 + $0x18] sm:$0xff]
    %v497 = vld [vmem:[#allocation5 + $0x20] sm:$0xff]
    %v498 = vld [vmem:[#allocation5 + $0x28] sm:$0xff]
    %v499 = vld [vmem:[#allocation5 + $0x30] sm:$0xff]
    %v500 = vld [vmem:[#allocation5 + $0x38] sm:$0xff]
    %v501 = vld [vmem:[#allocation5 + $0x40] sm:$0xff]
    %v502 = vld [vmem:[#allocation5 + $0x48] sm:$0xff]
    %v503 = vld [vmem:[#allocation5 + $0x50] sm:$0xff]
    %v504 = vld [vmem:[#allocation5 + $0x58] sm:$0xff]
    %v505 = vld [vmem:[#allocation5 + $0x60] sm:$0xff]
    %v506 = vld [vmem:[#allocation5 + $0x68] sm:$0xff]
    %v507 = vld [vmem:[#allocation5 + $0x70] sm:$0xff]
    %v508 = vld [vmem:[#allocation5 + $0x78] sm:$0xff]
    %v509 = vld [vmem:[#allocation5 + $0x80] sm:$0xff]
    %v510 = vld [vmem:[#allocation5 + $0x88] sm:$0xff]
    %v511 = vld [vmem:[#allocation5 + $0x90] sm:$0xff]
    %v512 = vld [vmem:[#allocation5 + $0x98] sm:$0xff]
    %v513 = vld [vmem:[#allocation5 + $0xa0] sm:$0xff]
    %v514 = vld [vmem:[#allocation5 + $0xa8] sm:$0xff]
    %v515 = vld [vmem:[#allocation5 + $0xb0] sm:$0xff]
    %v516 = vld [vmem:[#allocation5 + $0xb8] sm:$0xff]
    %v517 = vld [vmem:[#allocation5 + $0xc0] sm:$0xff]
    %v518 = vld [vmem:[#allocation5 + $0xc8] sm:$0xff]
    %v519 = vld [vmem:[#allocation5 + $0xd0] sm:$0xff]
    %v520 = vld [vmem:[#allocation5 + $0xd8] sm:$0xff]
    %v521 = vld [vmem:[#allocation5 + $0xe0] sm:$0xff]
    %v522 = vld [vmem:[#allocation5 + $0xe8] sm:$0xff]
    %v523 = vld [vmem:[#allocation5 + $0xf0] sm:$0xff]
    %v524 = vld [vmem:[#allocation5 + $0xf8] sm:$0xff]
    %v525 = vld [vmem:[#allocation5 + $0x100] sm:$0xff]
    %v526 = vld [vmem:[#allocation5 + $0x108] sm:$0xff]
    %v527 = vld [vmem:[#allocation5 + $0x110] sm:$0xff]
    %v528 = vld [vmem:[#allocation5 + $0x118] sm:$0xff]
    %v529 = vld [vmem:[#allocation5 + $0x120] sm:$0xff]
    %v530 = vld [vmem:[#allocation5 + $0x128] sm:$0xff]
    %v531 = vld [vmem:[#allocation5 + $0x130] sm:$0xff]
    %v532 = vld [vmem:[#allocation5 + $0x138] sm:$0xff]
    %v533 = vld [vmem:[#allocation5 + $0x140] sm:$0xff]
    %v534 = vld [vmem:[#allocation5 + $0x148] sm:$0xff]
    %v535 = vld [vmem:[#allocation5 + $0x150] sm:$0xff]
    %v536 = vld [vmem:[#allocation5 + $0x158] sm:$0xff]
    %v537 = vld [vmem:[#allocation5 + $0x160] sm:$0xff]
    %v538 = vld [vmem:[#allocation5 + $0x168] sm:$0xff]
    %v539 = vld [vmem:[#allocation5 + $0x170] sm:$0xff]
    %v540 = vld [vmem:[#allocation5 + $0x178] sm:$0xff]
    %v541 = vld [vmem:[#allocation5 + $0x180] sm:$0xff]
    %v542 = vld [vmem:[#allocation5 + $0x188] sm:$0xff]
    %v543 = vld [vmem:[#allocation5 + $0x190] sm:$0xff]
    %v544 = vld [vmem:[#allocation5 + $0x198] sm:$0xff]
    %v545 = vld [vmem:[#allocation5 + $0x1a0] sm:$0xff]
    %v546 = vld [vmem:[#allocation5 + $0x1a8] sm:$0xff]
    %v547 = vld [vmem:[#allocation5 + $0x1b0] sm:$0xff]
    %v548 = vld [vmem:[#allocation5 + $0x1b8] sm:$0xff]
    %v549 = vld [vmem:[#allocation5 + $0x1c0] sm:$0xff]
    %v550 = vld [vmem:[#allocation5 + $0x1c8] sm:$0xff]
    %v551 = vld [vmem:[#allocation5 + $0x1d0] sm:$0xff]
    %v552 = vld [vmem:[#allocation5 + $0x1d8] sm:$0xff]
    %v553 = vld [vmem:[#allocation5 + $0x1e0] sm:$0xff]
    %v554 = vld [vmem:[#allocation5 + $0x1e8] sm:$0xff]
    %v555 = vld [vmem:[#allocation5 + $0x1f0] sm:$0xff]
    %v556 = vld [vmem:[#allocation5 + $0x1f8] sm:$0xff]
    %v557 = vld [vmem:[#allocation5 + $0x200] sm:$0xff]
    %v558 = vld [vmem:[#allocation5 + $0x208] sm:$0xff]
    %v559 = vld [vmem:[#allocation5 + $0x210] sm:$0xff]
    %v560 = vld [vmem:[#allocation5 + $0x218] sm:$0xff]
    %v561 = vld [vmem:[#allocation5 + $0x220] sm:$0xff]
    %v562 = vld [vmem:[#allocation5 + $0x228] sm:$0xff]
    %v563 = vld [vmem:[#allocation5 + $0x230] sm:$0xff]
    %v564 = vld [vmem:[#allocation5 + $0x238] sm:$0xff]
    %v565 = vld [vmem:[#allocation5 + $0x240] sm:$0xff]
    %v566 = vld [vmem:[#allocation5 + $0x248] sm:$0xff]
    %v567 = vld [vmem:[#allocation5 + $0x250] sm:$0xff]
    %v568 = vld [vmem:[#allocation5 + $0x258] sm:$0xff]
    %v569 = vld [vmem:[#allocation5 + $0x260] sm:$0xff]
    %v570 = vld [vmem:[#allocation5 + $0x268] sm:$0xff]
    %v571 = vld [vmem:[#allocation5 + $0x270] sm:$0xff]
    %v572 = vld [vmem:[#allocation5 + $0x278] sm:$0xff]
    %v573 = vld [vmem:[#allocation5 + $0x280] sm:$0xff]
    %v574 = vld [vmem:[#allocation5 + $0x288] sm:$0xff]
    %v575 = vld [vmem:[#allocation5 + $0x290] sm:$0xff]
    %v576 = vld [vmem:[#allocation5 + $0x298] sm:$0xff]
    %v577 = vld [vmem:[#allocation5 + $0x2a0] sm:$0xff]
    %v578 = vld [vmem:[#allocation5 + $0x2a8] sm:$0xff]
    %v579 = vld [vmem:[#allocation5 + $0x2b0] sm:$0xff]
    %v580 = vld [vmem:[#allocation5 + $0x2b8] sm:$0xff]
    %v581 = vld [vmem:[#allocation5 + $0x2c0] sm:$0xff]
    %v582 = vld [vmem:[#allocation5 + $0x2c8] sm:$0xff]
    %v583 = vld [vmem:[#allocation5 + $0x2d0] sm:$0xff]
    %v584 = vld [vmem:[#allocation5 + $0x2d8] sm:$0xff]
    %v585 = vld [vmem:[#allocation5 + $0x2e0] sm:$0xff]
    %v586 = vld [vmem:[#allocation5 + $0x2e8] sm:$0xff]
    %v587 = vld [vmem:[#allocation5 + $0x2f0] sm:$0xff]
    %v588 = vld [vmem:[#allocation5 + $0x2f8] sm:$0xff]
    %v589 = vld [vmem:[#allocation5 + $0x300] sm:$0xff]
    %v590 = vld [vmem:[#allocation5 + $0x308] sm:$0xff]
    %v591 = vld [vmem:[#allocation5 + $0x310] sm:$0xff]
    %v592 = vld [vmem:[#allocation5 + $0x318] sm:$0xff]
    %v593 = vld [vmem:[#allocation5 + $0x320] sm:$0xff]
    %v594 = vld [vmem:[#allocation5 + $0x328] sm:$0xff]
    %v595 = vld [vmem:[#allocation5 + $0x330] sm:$0xff]
    %v596 = vld [vmem:[#allocation5 + $0x338] sm:$0xff]
    %v597 = vld [vmem:[#allocation5 + $0x340] sm:$0xff]
    %v598 = vld [vmem:[#allocation5 + $0x348] sm:$0xff]
    %v599 = vld [vmem:[#allocation5 + $0x350] sm:$0xff]
    %v600 = vld [vmem:[#allocation5 + $0x358] sm:$0xff]
    %v601 = vld [vmem:[#allocation5 + $0x360] sm:$0xff]
    %v602 = vld [vmem:[#allocation5 + $0x368] sm:$0xff]
    %v603 = vld [vmem:[#allocation5 + $0x370] sm:$0xff]
    %v604 = vld [vmem:[#allocation5 + $0x378] sm:$0xff]
    %v605 = vld [vmem:[#allocation5 + $0x380] sm:$0xff]
    %v606 = vld [vmem:[#allocation5 + $0x388] sm:$0xff]
    %v607 = vld [vmem:[#allocation5 + $0x390] sm:$0xff]
    %v608 = vld [vmem:[#allocation5 + $0x398] sm:$0xff]
    %v609 = vld [vmem:[#allocation5 + $0x3a0] sm:$0xff]
    %v610 = vld [vmem:[#allocation5 + $0x3a8] sm:$0xff]
    %v611 = vld [vmem:[#allocation5 + $0x3b0] sm:$0xff]
    %v612 = vld [vmem:[#allocation5 + $0x3b8] sm:$0xff]
    %v613 = vld [vmem:[#allocation5 + $0x3c0] sm:$0xff]
    %v614 = vld [vmem:[#allocation5 + $0x3c8] sm:$0xff]
    %v615 = vld [vmem:[#allocation5 + $0x3d0] sm:$0xff]
    %v616 = vld [vmem:[#allocation5 + $0x3d8] sm:$0xff]
    %v617 = vld [vmem:[#allocation5 + $0x3e0] sm:$0xff]
    %v618 = vld [vmem:[#allocation5 + $0x3e8] sm:$0xff]
    %v619 = vld [vmem:[#allocation5 + $0x3f0] sm:$0xff]
    %v620 = vld [vmem:[#allocation5 + $0x3f8] sm:$0xff]
    %v621 = vld [vmem:[%s2] sm:$0x1]
    %v623 = vlaneseq
    %v624 = vshrl.u32 %v623, 7
    %v625 = vsub.s32 0, %v624
    %v626 = vrot.slane %v621, %v625
    %628 = vmatprep.subr.mxu0 0.0
    %629 = vmatpush1.msra.mxu0 %v508
    %630 = vmatprep.subr.mxu0 0.0
    %631 = vmatpush1.msra.mxu0 %v507
    %632 = vmatprep.subr.mxu0 0.0
    %633 = vmatpush1.msra.mxu0 %v506
    %634 = vmatprep.subr.mxu0 0.0
    %635 = vmatpush1.msra.mxu0 %v505
    %636 = vmatprep.subr.mxu0 0.0
    %637 = vmatpush1.msra.mxu0 %v504
    %638 = vmatprep.subr.mxu0 0.0
    %639 = vmatpush1.msra.mxu0 %v503
    %640 = vmatprep.subr.mxu0 0.0
    %641 = vmatpush1.msra.mxu0 %v502
    %642 = vmatprep.subr.mxu0 0.0
    %643 = vmatpush1.msra.mxu0 %v501
    %644 = vmatprep.subr.mxu0 0.0
    %645 = vmatpush1.msra.mxu0 %v500
    %646 = vmatprep.subr.mxu0 0.0
    %647 = vmatpush1.msra.mxu0 %v499
    %648 = vmatprep.subr.mxu0 0.0
    %649 = vmatpush1.msra.mxu0 %v498
    %650 = vmatprep.subr.mxu0 0.0
    %651 = vmatpush1.msra.mxu0 %v497
    %652 = vmatprep.subr.mxu0 0.0
    %653 = vmatpush1.msra.mxu0 %v496
    %654 = vmatprep.subr.mxu0 0.0
    %655 = vmatpush1.msra.mxu0 %v495
    %656 = vmatprep.subr.mxu0 0.0
    %657 = vmatpush1.msra.mxu0 %v494
    %658 = vmatprep.subr.mxu0 0.0
    %659 = vmatpush1.msra.mxu0 %v493
    %660 = vmatprep.subr.mxu0 0.0
    %661 = vmatpush2.msra.mxu0 %v524
    %662 = vmatprep.subr.mxu0 0.0
    %663 = vmatpush2.msra.mxu0 %v523
    %664 = vmatprep.subr.mxu0 0.0
    %665 = vmatpush2.msra.mxu0 %v522
    %666 = vmatprep.subr.mxu0 0.0
    %667 = vmatpush2.msra.mxu0 %v521
    %668 = vmatprep.subr.mxu0 0.0
    %669 = vmatpush2.msra.mxu0 %v520
    %670 = vmatprep.subr.mxu0 0.0
    %671 = vmatpush2.msra.mxu0 %v519
    %672 = vmatprep.subr.mxu0 0.0
    %673 = vmatpush2.msra.mxu0 %v518
    %674 = vmatprep.subr.mxu0 0.0
    %675 = vmatpush2.msra.mxu0 %v517
    %676 = vmatprep.subr.mxu0 0.0
    %677 = vmatpush2.msra.mxu0 %v516
    %678 = vmatprep.subr.mxu0 0.0
    %679 = vmatpush2.msra.mxu0 %v515
    %680 = vmatprep.subr.mxu0 0.0
    %681 = vmatpush2.msra.mxu0 %v514
    %682 = vmatprep.subr.mxu0 0.0
    %683 = vmatpush2.msra.mxu0 %v513
    %684 = vmatprep.subr.mxu0 0.0
    %685 = vmatpush2.msra.mxu0 %v512
    %686 = vmatprep.subr.mxu0 0.0
    %687 = vmatpush2.msra.mxu0 %v511
    %688 = vmatprep.subr.mxu0 0.0
    %689 = vmatpush2.msra.mxu0 %v510
    %690 = vmatprep.subr.mxu0 0.0
    %691 = vmatpush2.msra.mxu0 %v509
    %692 = vmatprep.mubr.f32.mxu0 %v463
    %693 = vmatmul.mubr.f32.gmra.mxu0 %v147
    %v694 = vpop.f32.mrf.mxu0
    %v695 = vadd.f32 %v626, %v694
    %v696 = vpop.f32.mrf.mxu0
    %697 = vmatprep.mubr.f32.mxu0 %v464
    %698 = vmatmul.mubr.f32.gmra.mxu0 %v250
    %v699 = vpop.f32.mrf.mxu0
    %v700 = vadd.f32 %v626, %v699
    %v701 = vpop.f32.mrf.mxu0
    %702 = vdwg.mxu0
    %703 = vmatprep.subr.mxu0 0.0
    %704 = vmatpush1.msra.mxu0 %v540
    %705 = vmatprep.subr.mxu0 0.0
    %706 = vmatpush1.msra.mxu0 %v539
    %707 = vmatprep.subr.mxu0 0.0
    %708 = vmatpush1.msra.mxu0 %v538
    %709 = vmatprep.subr.mxu0 0.0
    %710 = vmatpush1.msra.mxu0 %v537
    %711 = vmatprep.subr.mxu0 0.0
    %712 = vmatpush1.msra.mxu0 %v536
    %713 = vmatprep.subr.mxu0 0.0
    %714 = vmatpush1.msra.mxu0 %v535
    %715 = vmatprep.subr.mxu0 0.0
    %716 = vmatpush1.msra.mxu0 %v534
    %717 = vmatprep.subr.mxu0 0.0
    %718 = vmatpush1.msra.mxu0 %v533
    %719 = vmatprep.subr.mxu0 0.0
    %720 = vmatpush1.msra.mxu0 %v532
    %721 = vmatprep.subr.mxu0 0.0
    %722 = vmatpush1.msra.mxu0 %v531
    %723 = vmatprep.subr.mxu0 0.0
    %724 = vmatpush1.msra.mxu0 %v530
    %725 = vmatprep.subr.mxu0 0.0
    %726 = vmatpush1.msra.mxu0 %v529
    %727 = vmatprep.subr.mxu0 0.0
    %728 = vmatpush1.msra.mxu0 %v528
    %729 = vmatprep.subr.mxu0 0.0
    %730 = vmatpush1.msra.mxu0 %v527
    %731 = vmatprep.subr.mxu0 0.0
    %732 = vmatpush1.msra.mxu0 %v526
    %733 = vmatprep.subr.mxu0 0.0
    %734 = vmatpush1.msra.mxu0 %v525
    %735 = vmatprep.subr.mxu0 0.0
    %736 = vmatpush2.msra.mxu0 %v556
    %737 = vmatprep.subr.mxu0 0.0
    %738 = vmatpush2.msra.mxu0 %v555
    %739 = vmatprep.subr.mxu0 0.0
    %740 = vmatpush2.msra.mxu0 %v554
    %741 = vmatprep.subr.mxu0 0.0
    %742 = vmatpush2.msra.mxu0 %v553
    %743 = vmatprep.subr.mxu0 0.0
    %744 = vmatpush2.msra.mxu0 %v552
    %745 = vmatprep.subr.mxu0 0.0
    %746 = vmatpush2.msra.mxu0 %v551
    %747 = vmatprep.subr.mxu0 0.0
    %748 = vmatpush2.msra.mxu0 %v550
    %749 = vmatprep.subr.mxu0 0.0
    %750 = vmatpush2.msra.mxu0 %v549
    %751 = vmatprep.subr.mxu0 0.0
    %752 = vmatpush2.msra.mxu0 %v548
    %753 = vmatprep.subr.mxu0 0.0
    %754 = vmatpush2.msra.mxu0 %v547
    %755 = vmatprep.subr.mxu0 0.0
    %756 = vmatpush2.msra.mxu0 %v546
    %757 = vmatprep.subr.mxu0 0.0
    %758 = vmatpush2.msra.mxu0 %v545
    %759 = vmatprep.subr.mxu0 0.0
    %760 = vmatpush2.msra.mxu0 %v544
    %761 = vmatprep.subr.mxu0 0.0
    %762 = vmatpush2.msra.mxu0 %v543
    %763 = vmatprep.subr.mxu0 0.0
    %764 = vmatpush2.msra.mxu0 %v542
    %765 = vmatprep.subr.mxu0 0.0
    %766 = vmatpush2.msra.mxu0 %v541
    %767 = vmatprep.mubr.f32.mxu0 %v485
    %768 = vmatmul.mubr.f32.gmra.mxu0 %v473
    %v769 = vpop.f32.mrf.mxu0
    %v770 = vadd.f32 %v695, %v769
    %v771 = vpop.f32.mrf.mxu0
    %772 = vmatprep.mubr.f32.mxu0 %v486
    %773 = vmatmul.mubr.f32.gmra.mxu0 %v474
    %v774 = vpop.f32.mrf.mxu0
    %v775 = vadd.f32 %v700, %v774
    %v776 = vpop.f32.mrf.mxu0
    %777 = vdwg.mxu0
    %778 = vmatprep.subr.mxu0 0.0
    %779 = vmatpush1.msra.mxu0 %v572
    %780 = vmatprep.subr.mxu0 0.0
    %781 = vmatpush1.msra.mxu0 %v571
    %782 = vmatprep.subr.mxu0 0.0
    %783 = vmatpush1.msra.mxu0 %v570
    %784 = vmatprep.subr.mxu0 0.0
    %785 = vmatpush1.msra.mxu0 %v569
    %786 = vmatprep.subr.mxu0 0.0
    %787 = vmatpush1.msra.mxu0 %v568
    %788 = vmatprep.subr.mxu0 0.0
    %789 = vmatpush1.msra.mxu0 %v567
    %790 = vmatprep.subr.mxu0 0.0
    %791 = vmatpush1.msra.mxu0 %v566
    %792 = vmatprep.subr.mxu0 0.0
    %793 = vmatpush1.msra.mxu0 %v565
    %794 = vmatprep.subr.mxu0 0.0
    %795 = vmatpush1.msra.mxu0 %v564
    %796 = vmatprep.subr.mxu0 0.0
    %797 = vmatpush1.msra.mxu0 %v563
    %798 = vmatprep.subr.mxu0 0.0
    %799 = vmatpush1.msra.mxu0 %v562
    %800 = vmatprep.subr.mxu0 0.0
    %801 = vmatpush1.msra.mxu0 %v561
    %802 = vmatprep.subr.mxu0 0.0
    %803 = vmatpush1.msra.mxu0 %v560
    %804 = vmatprep.subr.mxu0 0.0
    %805 = vmatpush1.msra.mxu0 %v559
    %806 = vmatprep.subr.mxu0 0.0
    %807 = vmatpush1.msra.mxu0 %v558
    %808 = vmatprep.subr.mxu0 0.0
    %809 = vmatpush1.msra.mxu0 %v557
    %810 = vmatprep.subr.mxu0 0.0
    %811 = vmatpush2.msra.mxu0 %v588
    %812 = vmatprep.subr.mxu0 0.0
    %813 = vmatpush2.msra.mxu0 %v587
    %814 = vmatprep.subr.mxu0 0.0
    %815 = vmatpush2.msra.mxu0 %v586
    %816 = vmatprep.subr.mxu0 0.0
    %817 = vmatpush2.msra.mxu0 %v585
    %818 = vmatprep.subr.mxu0 0.0
    %819 = vmatpush2.msra.mxu0 %v584
    %820 = vmatprep.subr.mxu0 0.0
    %821 = vmatpush2.msra.mxu0 %v583
    %822 = vmatprep.subr.mxu0 0.0
    %823 = vmatpush2.msra.mxu0 %v582
    %824 = vmatprep.subr.mxu0 0.0
    %825 = vmatpush2.msra.mxu0 %v581
    %826 = vmatprep.subr.mxu0 0.0
    %827 = vmatpush2.msra.mxu0 %v580
    %828 = vmatprep.subr.mxu0 0.0
    %829 = vmatpush2.msra.mxu0 %v579
    %830 = vmatprep.subr.mxu0 0.0
    %831 = vmatpush2.msra.mxu0 %v578
    %832 = vmatprep.subr.mxu0 0.0
    %833 = vmatpush2.msra.mxu0 %v577
    %834 = vmatprep.subr.mxu0 0.0
    %835 = vmatpush2.msra.mxu0 %v576
    %836 = vmatprep.subr.mxu0 0.0
    %837 = vmatpush2.msra.mxu0 %v575
    %838 = vmatprep.subr.mxu0 0.0
    %839 = vmatpush2.msra.mxu0 %v574
    %840 = vmatprep.subr.mxu0 0.0
    %841 = vmatpush2.msra.mxu0 %v573
    %842 = vmatprep.mubr.f32.mxu0 %v467
    %843 = vmatmul.mubr.f32.gmra.mxu0 %v354
    %v844 = vpop.f32.mrf.mxu0
    %v845 = vadd.f32 %v770, %v844
    %v846 = vpop.f32.mrf.mxu0
    %847 = vmatprep.mubr.f32.mxu0 %v468
    %848 = vmatmul.mubr.f32.gmra.mxu0 %v458
    %v849 = vpop.f32.mrf.mxu0
    %v850 = vadd.f32 %v775, %v849
    %v851 = vpop.f32.mrf.mxu0
    %852 = vdwg.mxu0
    %853 = vmatprep.subr.mxu0 0.0
    %854 = vmatpush1.msra.mxu0 %v604
    %855 = vmatprep.subr.mxu0 0.0
    %856 = vmatpush1.msra.mxu0 %v603
    %857 = vmatprep.subr.mxu0 0.0
    %858 = vmatpush1.msra.mxu0 %v602
    %859 = vmatprep.subr.mxu0 0.0
    %860 = vmatpush1.msra.mxu0 %v601
    %861 = vmatprep.subr.mxu0 0.0
    %862 = vmatpush1.msra.mxu0 %v600
    %863 = vmatprep.subr.mxu0 0.0
    %864 = vmatpush1.msra.mxu0 %v599
    %865 = vmatprep.subr.mxu0 0.0
    %866 = vmatpush1.msra.mxu0 %v598
    %867 = vmatprep.subr.mxu0 0.0
    %868 = vmatpush1.msra.mxu0 %v597
    %869 = vmatprep.subr.mxu0 0.0
    %870 = vmatpush1.msra.mxu0 %v596
    %871 = vmatprep.subr.mxu0 0.0
    %872 = vmatpush1.msra.mxu0 %v595
    %873 = vmatprep.subr.mxu0 0.0
    %874 = vmatpush1.msra.mxu0 %v594
    %875 = vmatprep.subr.mxu0 0.0
    %876 = vmatpush1.msra.mxu0 %v593
    %877 = vmatprep.subr.mxu0 0.0
    %878 = vmatpush1.msra.mxu0 %v592
    %879 = vmatprep.subr.mxu0 0.0
    %880 = vmatpush1.msra.mxu0 %v591
    %881 = vmatprep.subr.mxu0 0.0
    %882 = vmatpush1.msra.mxu0 %v590
    %883 = vmatprep.subr.mxu0 0.0
    %884 = vmatpush1.msra.mxu0 %v589
    %885 = vmatprep.subr.mxu0 0.0
    %886 = vmatpush2.msra.mxu0 %v620
    %887 = vmatprep.subr.mxu0 0.0
    %888 = vmatpush2.msra.mxu0 %v619
    %889 = vmatprep.subr.mxu0 0.0
    %890 = vmatpush2.msra.mxu0 %v618
    %891 = vmatprep.subr.mxu0 0.0
    %892 = vmatpush2.msra.mxu0 %v617
    %893 = vmatprep.subr.mxu0 0.0
    %894 = vmatpush2.msra.mxu0 %v616
    %895 = vmatprep.subr.mxu0 0.0
    %896 = vmatpush2.msra.mxu0 %v615
    %897 = vmatprep.subr.mxu0 0.0
    %898 = vmatpush2.msra.mxu0 %v614
    %899 = vmatprep.subr.mxu0 0.0
    %900 = vmatpush2.msra.mxu0 %v613
    %901 = vmatprep.subr.mxu0 0.0
    %902 = vmatpush2.msra.mxu0 %v612
    %903 = vmatprep.subr.mxu0 0.0
    %904 = vmatpush2.msra.mxu0 %v611
    %905 = vmatprep.subr.mxu0 0.0
    %906 = vmatpush2.msra.mxu0 %v610
    %907 = vmatprep.subr.mxu0 0.0
    %908 = vmatpush2.msra.mxu0 %v609
    %909 = vmatprep.subr.mxu0 0.0
    %910 = vmatpush2.msra.mxu0 %v608
    %911 = vmatprep.subr.mxu0 0.0
    %912 = vmatpush2.msra.mxu0 %v607
    %913 = vmatprep.subr.mxu0 0.0
    %914 = vmatpush2.msra.mxu0 %v606
    %915 = vmatprep.subr.mxu0 0.0
    %916 = vmatpush2.msra.mxu0 %v605
    %917 = vmatprep.mubr.f32.mxu0 %v491
    %918 = vmatmul.mubr.f32.gmra.mxu0 %v479
    %v919 = vpop.f32.mrf.mxu0
    %v920 = vadd.f32 %v845, %v919
    %v921 = vpop.f32.mrf.mxu0
    %922 = vmatprep.mubr.f32.mxu0 %v492
    %923 = vmatmul.mubr.f32.gmra.mxu0 %v480
    %v924 = vpop.f32.mrf.mxu0
    %v925 = vadd.f32 %v850, %v924
    %v926 = vpop.f32.mrf.mxu0
    %927 = vdwg.mxu0
    %928 = vst [vmem:[#allocation7] sm:$0xff] %v920
    %929 = vst [vmem:[#allocation7 + $0x8] sm:$0xff] %v925
    // Predicated region
    $region22: #{tpu_custom_call.1} parent=1 // pred_check
      _
    $region23: #{tpu_custom_call.1} parent=1 // pred_check_branch
      %931 = sbr.rel (0) target = $region25
    $region24: #{tpu_custom_call.1} parent=1 // pred_region
      %s933 = ssub.s32 256, 256
      %934 = vsyncadd [#allocation4], %s933
      %s935 = sshll.u32 [#allocation7], 4
      %s936 = int_to_ptr.vmem [resolvable:$true] %s935
      %941 = dma.vmem_to_hbm [thread:$0]  %s936, 256, %s3, [#allocation4], 128, 128, 8
    $region25: #{tpu_custom_call.1} parent=1 // pred_fallthru
      _
    // Predicated region
    $region26: #{tpu_custom_call.1} parent=1 // pred_check
      _
    $region27: #{tpu_custom_call.1} parent=1 // pred_check_branch
      %943 = sbr.rel (0) target = $region29
    $region28: #{tpu_custom_call.1} parent=1 // pred_region
      %944 = dma.done [#allocation4], 256
    $region29: #{tpu_custom_call.1} parent=1 // pred_fallthru
      _
    %945 = vsyncpa [#allocation3], 1
    %946 = vsyncpa [#allocation6], 1
    %947 = vsyncpa [#allocation4], 1

</llo_original>
